<compile_context>
chip_gen: v6e
topology: v6e:2x2x1
jax: 0.10.0
libtpu: 0.0.40
codegen_flags: <defaults>
</compile_context>

<pallas_src>
import jax
import jax.numpy as jnp
from jax.experimental import pallas as pl
from jax.experimental.pallas import tpu as pltpu


def _mlp_kernel(x_ref, w1_ref, b1_ref, w2_ref, b2_ref, o_ref):
    # fc1 + ReLU: (TB, D) @ (D, H) on the MXU (f32 accumulate), bias/ReLU on VPU.
    h = jnp.dot(x_ref[...], w1_ref[...], preferred_element_type=jnp.float32)
    h = jnp.maximum(h + b1_ref[...], 0.0)                      # (TB, H)
    # fc2: full 128-lane matmul (MXU is essentially idle; wasted columns are
    # free), then store only the first A lanes -> narrow HBM writeback.
    out = jnp.dot(h, w2_ref[...], preferred_element_type=jnp.float32)
    out = out + b2_ref[...]                                    # (TB, A_pad)
    a = o_ref.shape[-1]
    o_ref[...] = out[:, :a].astype(o_ref.dtype)                # (TB, A)


def prepare_params(w1, b1, w2, b2):
    """One-time parameter packing (call once / on weight update), hoisted off
    the per-forward path per the perf review."""
    D, H = w1.shape
    H2, A = w2.shape
    assert H2 == H
    # Pad fc2's output dim to a full 128-lane tile so the second matmul is a
    # plain full-width MXU op.  The padding never reaches HBM on the output
    # side (kernel stores only the first A lanes).
    A_pad = pl.cdiv(A, 128) * 128
    w2_p = jnp.zeros((H, A_pad), w2.dtype).at[:, :A].set(w2)
    b2_p = jnp.zeros((1, A_pad), b2.dtype).at[0, :A].set(b2)
    return {"w1": w1, "b1": b1.reshape(1, H), "w2": w2_p, "b2": b2_p,
            "n_actions": A}


def neural_network_forward(state, params, *, block_b=2048):
    """state: (B, input_dim) f32; returns (B, n_actions) f32."""
    B, D = state.shape
    H = params["w1"].shape[1]
    A = params["n_actions"]
    A_pad = params["w2"].shape[1]

    if B <= block_b:
        # Common DQN case: whole batch in one grid step.  Block == full array,
        # so no divisibility constraints, no batch padding, no output slicing.
        TB, nb = B, 1
    else:
        TB = max(8, (min(block_b, B) // 8) * 8)
        nb = pl.cdiv(B, TB)
        # v7x megacore: keep the number of parallel batch blocks even so both
        # TensorCores get balanced work (no-op on single-core v5e/v6e).
        if nb % 2 == 1:
            TB = max(8, ((pl.cdiv(B, nb + 1) + 7) // 8) * 8)
            nb = pl.cdiv(B, TB)

    B_pad = nb * TB
    x = state
    if B_pad != B:
        # Rare ragged multi-block tail; common paths never take this copy.
        x = jnp.pad(state, ((0, B_pad - B), (0, 0)))

    out = pl.pallas_call(
        _mlp_kernel,
        out_shape=jax.ShapeDtypeStruct((B_pad, A), jnp.float32),
        grid_spec=pl.GridSpec(
            grid=(nb,),
            in_specs=[
                # state: tiled along batch -> pipelined DMA per grid step
                pl.BlockSpec((TB, D), lambda i: (i, 0)),
                # weights / biases: constant index maps -> VMEM-resident,
                # loaded once and reused by every grid step
                pl.BlockSpec((D, H), lambda i: (0, 0)),
                pl.BlockSpec((1, H), lambda i: (0, 0)),
                pl.BlockSpec((H, A_pad), lambda i: (0, 0)),
                pl.BlockSpec((1, A_pad), lambda i: (0, 0)),
            ],
            # narrow (TB, A) output block: only the real Q-values hit HBM
            out_specs=pl.BlockSpec((TB, A), lambda i: (i, 0)),
        ),
        compiler_params=pltpu.CompilerParams(
            dimension_semantics=("parallel",)),
    )(x, params["w1"], params["b1"], params["w2"], params["b2"])

    return out if B_pad == B else out[:B]


def init_params(key, input_dim, n_actions, hidden=128):
    """Deterministic init mimicking PyTorch nn.Linear (U(-1/sqrt(fan_in), +))."""
    k1, k2, k3, k4 = jax.random.split(key, 4)
    bound1 = 1.0 / jnp.sqrt(jnp.float32(input_dim))
    bound2 = 1.0 / jnp.sqrt(jnp.float32(hidden))
    w1 = jax.random.uniform(k1, (input_dim, hidden), jnp.float32, -bound1, bound1)
    b1 = jax.random.uniform(k2, (hidden,), jnp.float32, -bound1, bound1)
    w2 = jax.random.uniform(k3, (hidden, n_actions), jnp.float32, -bound2, bound2)
    b2 = jax.random.uniform(k4, (n_actions,), jnp.float32, -bound2, bound2)
    return w1, b1, w2, b2


if __name__ == "__main__":
    key = jax.random.PRNGKey(0)
    batch, input_dim, n_actions = 300, 8, 4

    kp, kx = jax.random.split(key)
    w1, b1, w2, b2 = init_params(kp, input_dim, n_actions)
    params = prepare_params(w1, b1, w2, b2)   # one-time packing (hoisted)

    # Reference in plain JAX (same default matmul precision as the kernel's
    # MXU path, so a tight tolerance is valid on all generations).
    state = jax.random.normal(kx, (batch, input_dim), jnp.float32)
    ref = jnp.maximum(state @ w1 + b1, 0.0) @ w2 + b2

    # 1) Common DQN path: whole batch in a single grid step (no pad, no slice).
    actions = jax.block_until_ready(neural_network_forward(state, params))
    assert actions.shape == (batch, n_actions)
    assert jnp.allclose(actions, ref, atol=1e-5, rtol=1e-5)

    # 2) Tiled path: batch split into an even number of blocks (v7x-friendly),
    #    exactly divisible so no padding/slicing either.
    state2 = jax.random.normal(kx, (512, input_dim), jnp.float32)
    ref2 = jnp.maximum(state2 @ w1 + b1, 0.0) @ w2 + b2
    actions2 = jax.block_until_ready(
        neural_network_forward(state2, params, block_b=128))
    assert actions2.shape == (512, n_actions)
    assert jnp.allclose(actions2, ref2, atol=1e-5, rtol=1e-5)

    print("KERNEL_OK")
</pallas_src>

<mosaic_0001>
module attributes {stable_mosaic.version = 11 : i64} {
  func.func @_mlp_kernel(%arg0: i32, %arg1: memref<300x8xf32, #tpu.memory_space<vmem>>, %arg2: memref<8x128xf32, #tpu.memory_space<vmem>>, %arg3: memref<1x128xf32, #tpu.memory_space<vmem>>, %arg4: memref<128x128xf32, #tpu.memory_space<vmem>>, %arg5: memref<1x128xf32, #tpu.memory_space<vmem>>, %arg6: memref<300x4xf32, #tpu.memory_space<vmem>>) attributes {dimension_semantics = [#tpu.dimension_semantics<parallel>], iteration_bounds = array<i64: 1>, scalar_prefetch = 0 : i64, scratch_operands = 0 : i64, tpu.core_type = #tpu.core_type<tc>, window_params = [{transform_indices = @transform_0, window_bounds = array<i64: 300, 8>}, {pipeline_mode = #tpu.pipeline_mode<synchronous>, transform_indices = @transform_1, window_bounds = array<i64: 8, 128>}, {pipeline_mode = #tpu.pipeline_mode<synchronous>, transform_indices = @transform_2, window_bounds = array<i64: 1, 128>}, {pipeline_mode = #tpu.pipeline_mode<synchronous>, transform_indices = @transform_3, window_bounds = array<i64: 128, 128>}, {pipeline_mode = #tpu.pipeline_mode<synchronous>, transform_indices = @transform_4, window_bounds = array<i64: 1, 128>}, {transform_indices = @transform_5, window_bounds = array<i64: 300, 4>}]} {
    %c0 = arith.constant 0 : index
    %c0_0 = arith.constant 0 : index
    %0 = vector.load %arg1[%c0, %c0_0] : memref<300x8xf32, #tpu.memory_space<vmem>>, vector<300x8xf32>
    %c0_1 = arith.constant 0 : index
    %c0_2 = arith.constant 0 : index
    %1 = vector.load %arg2[%c0_1, %c0_2] : memref<8x128xf32, #tpu.memory_space<vmem>>, vector<8x128xf32>
    %cst = arith.constant dense<0.000000e+00> : vector<300x128xf32>
    %2 = tpu.matmul %0, %1, %cst {dimension_numbers = #tpu.dot_dimension_numbers<[1], [0], [0], [1], [0, 0, 1, 1], [], []>} : vector<300x8xf32>, vector<8x128xf32>, vector<300x128xf32> -> vector<300x128xf32>
    %c0_3 = arith.constant 0 : index
    %c0_4 = arith.constant 0 : index
    %3 = vector.load %arg3[%c0_3, %c0_4] : memref<1x128xf32, #tpu.memory_space<vmem>>, vector<1x128xf32>
    %4 = vector.broadcast %3 : vector<1x128xf32> to vector<300x128xf32>
    %5 = arith.addf %2, %4 : vector<300x128xf32>
    %cst_5 = arith.constant 0.000000e+00 : f32
    %6 = vector.broadcast %cst_5 : f32 to vector<300x128xf32>
    %7 = arith.maximumf %5, %6 : vector<300x128xf32>
    %c0_6 = arith.constant 0 : index
    %c0_7 = arith.constant 0 : index
    %8 = vector.load %arg4[%c0_6, %c0_7] : memref<128x128xf32, #tpu.memory_space<vmem>>, vector<128x128xf32>
    %cst_8 = arith.constant dense<0.000000e+00> : vector<300x128xf32>
    %9 = tpu.matmul %7, %8, %cst_8 {dimension_numbers = #tpu.dot_dimension_numbers<[1], [0], [0], [1], [0, 0, 1, 1], [], []>} : vector<300x128xf32>, vector<128x128xf32>, vector<300x128xf32> -> vector<300x128xf32>
    %c0_9 = arith.constant 0 : index
    %c0_10 = arith.constant 0 : index
    %10 = vector.load %arg5[%c0_9, %c0_10] : memref<1x128xf32, #tpu.memory_space<vmem>>, vector<1x128xf32>
    %11 = vector.broadcast %10 : vector<1x128xf32> to vector<300x128xf32>
    %12 = arith.addf %9, %11 : vector<300x128xf32>
    %13 = vector.extract_strided_slice %12 {offsets = [0, 0], sizes = [300, 4], strides = [1, 1]} : vector<300x128xf32> to vector<300x4xf32>
    %c0_11 = arith.constant 0 : index
    %c0_12 = arith.constant 0 : index
    %14 = vector.load %arg6[%c0_11, %c0_12] : memref<300x4xf32, #tpu.memory_space<vmem>>, vector<300x4xf32>
    tpu.vector_store %arg6[%c0_11, %c0_12], %13 {strides = array<i32>} : memref<300x4xf32, #tpu.memory_space<vmem>>, vector<300x4xf32>,
    return
  }
  func.func @transform_0(%arg0: i32) -> (i32, i32) {
    %c0_i32 = arith.constant 0 : i32
    %c0_i32_0 = arith.constant 0 : i32
    return %arg0, %c0_i32 : i32, i32
  }
  func.func @transform_1(%arg0: i32) -> (i32, i32) {
    %c0_i32 = arith.constant 0 : i32
    %c0_i32_0 = arith.constant 0 : i32
    %c0_i32_1 = arith.constant 0 : i32
    return %c0_i32, %c0_i32_0 : i32, i32
  }
  func.func @transform_2(%arg0: i32) -> (i32, i32) {
    %c0_i32 = arith.constant 0 : i32
    %c0_i32_0 = arith.constant 0 : i32
    %c0_i32_1 = arith.constant 0 : i32
    return %c0_i32, %c0_i32_0 : i32, i32
  }
  func.func @transform_3(%arg0: i32) -> (i32, i32) {
    %c0_i32 = arith.constant 0 : i32
    %c0_i32_0 = arith.constant 0 : i32
    %c0_i32_1 = arith.constant 0 : i32
    return %c0_i32, %c0_i32_0 : i32, i32
  }
  func.func @transform_4(%arg0: i32) -> (i32, i32) {
    %c0_i32 = arith.constant 0 : i32
    %c0_i32_0 = arith.constant 0 : i32
    %c0_i32_1 = arith.constant 0 : i32
    return %c0_i32, %c0_i32_0 : i32, i32
  }
  func.func @transform_5(%arg0: i32) -> (i32, i32) {
    %c0_i32 = arith.constant 0 : i32
    %c0_i32_0 = arith.constant 0 : i32
    return %arg0, %c0_i32 : i32, i32
  }
}

</mosaic_0001>

<llo_original>
// kernel: tpu_custom_call.1
$region0: #{tpu_custom_call.1}
  #allocation0 [shape = 'u32[]', space=smem, size = 0x4, offset = 0x4, fixed_abs, tag = 'smem constant byte address 0x4 - core index']
  #allocation1 [shape = 'u32[144,128]{1,0:T(1,128)}', space=vmem, size = 0x12000, scoped, tag = 'internal scratch']
  %s0 = inlined_call_operand.vmem [shape: f32[300,8], index: 0, kind: input, shape index: {}]
  %s1 = inlined_call_operand.vmem [shape: f32[8,128], index: 1, kind: input, shape index: {}]
  %s2 = inlined_call_operand.vmem [shape: f32[1,128], index: 2, kind: input, shape index: {}]
  %s3 = inlined_call_operand.vmem [shape: f32[128,128], index: 3, kind: input, shape index: {}]
  %s4 = inlined_call_operand.vmem [shape: f32[1,128], index: 4, kind: input, shape index: {}]
  %s5 = inlined_call_operand.vmem [shape: f32[300,4], index: 5, kind: output, shape index: {}]
  %s6 = sld [smem:[#allocation0]]
  $region30: #{tpu_custom_call.1} parent=0
    _
  %s8 = ssub.s32 1, %s6
  %s9 = scalar_select 0, %s8, %s6
  // Predicated region
  $region2: #{tpu_custom_call.1} parent=0 // pred_check
    _
  $region3: #{tpu_custom_call.1} parent=0 // pred_check_branch
    %11 = sbr.rel (0) target = $region5
  $region4: #{tpu_custom_call.1} parent=0 // pred_region
    _
  $region5: #{tpu_custom_call.1} parent=0 // pred_fallthru
    _
  // Predicated region
  $region6: #{tpu_custom_call.1} parent=0 // pred_check
    _
  $region7: #{tpu_custom_call.1} parent=0 // pred_check_branch
    %13 = sbr.rel (0) target = $region9
  $region8: #{tpu_custom_call.1} parent=0 // pred_region
    _
  $region9: #{tpu_custom_call.1} parent=0 // pred_fallthru
    _
  // Predicated region
  $region10: #{tpu_custom_call.1} parent=0 // pred_check
    _
  $region11: #{tpu_custom_call.1} parent=0 // pred_check_branch
    %15 = sbr.rel (0) target = $region13
  $region12: #{tpu_custom_call.1} parent=0 // pred_region
    _
  $region13: #{tpu_custom_call.1} parent=0 // pred_fallthru
    _
  // Predicated region
  $region14: #{tpu_custom_call.1} parent=0 // pred_check
    _
  $region15: #{tpu_custom_call.1} parent=0 // pred_check_branch
    %17 = sbr.rel (0) target = $region17
  $region16: #{tpu_custom_call.1} parent=0 // pred_region
    _
  $region17: #{tpu_custom_call.1} parent=0 // pred_fallthru
    _
  // Predicated region
  $region18: #{tpu_custom_call.1} parent=0 // pred_check
    _
  $region19: #{tpu_custom_call.1} parent=0 // pred_check_branch
    %19 = sbr.rel (0) target = $region21
  $region20: #{tpu_custom_call.1} parent=0 // pred_region
    _
  $region21: #{tpu_custom_call.1} parent=0 // pred_fallthru
    _
  %v20 = vld [vmem:[%s0] sm:$0xff]
  %v21 = vld [vmem:[%s0 + $0x8] sm:$0xff]
  %v22 = vld [vmem:[%s0 + $0x10] sm:$0xff]
  %v23 = vld [vmem:[%s0 + $0x18] sm:$0xff]
  %v24 = vld [vmem:[%s0 + $0x20] sm:$0xff]
  %v25 = vld [vmem:[%s0 + $0x28] sm:$0xff]
  %v26 = vld [vmem:[%s0 + $0x30] sm:$0xff]
  %v27 = vld [vmem:[%s0 + $0x38] sm:$0xff]
  %v28 = vld [vmem:[%s0 + $0x40] sm:$0xff]
  %v29 = vld [vmem:[%s0 + $0x48] sm:$0xff]
  %v30 = vld [vmem:[%s0 + $0x50] sm:$0xff]
  %v31 = vld [vmem:[%s0 + $0x58] sm:$0xff]
  %v32 = vld [vmem:[%s0 + $0x60] sm:$0xff]
  %v33 = vld [vmem:[%s0 + $0x68] sm:$0xff]
  %v34 = vld [vmem:[%s0 + $0x70] sm:$0xff]
  %v35 = vld [vmem:[%s0 + $0x78] sm:$0xff]
  %v36 = vld [vmem:[%s0 + $0x80] sm:$0xff]
  %v37 = vld [vmem:[%s0 + $0x88] sm:$0xff]
  %v38 = vld [vmem:[%s0 + $0x90] sm:$0xff]
  %v39 = vld [vmem:[%s0 + $0x98] sm:$0xff]
  %v40 = vld [vmem:[%s0 + $0xa0] sm:$0xff]
  %v41 = vld [vmem:[%s0 + $0xa8] sm:$0xff]
  %v42 = vld [vmem:[%s0 + $0xb0] sm:$0xff]
  %v43 = vld [vmem:[%s0 + $0xb8] sm:$0xff]
  %v44 = vld [vmem:[%s0 + $0xc0] sm:$0xff]
  %v45 = vld [vmem:[%s0 + $0xc8] sm:$0xff]
  %v46 = vld [vmem:[%s0 + $0xd0] sm:$0xff]
  %v47 = vld [vmem:[%s0 + $0xd8] sm:$0xff]
  %v48 = vld [vmem:[%s0 + $0xe0] sm:$0xff]
  %v49 = vld [vmem:[%s0 + $0xe8] sm:$0xff]
  %v50 = vld [vmem:[%s0 + $0xf0] sm:$0xff]
  %v51 = vld [vmem:[%s0 + $0xf8] sm:$0xff]
  %v52 = vld [vmem:[%s0 + $0x100] sm:$0xff]
  %v53 = vld [vmem:[%s0 + $0x108] sm:$0xff]
  %v54 = vld [vmem:[%s0 + $0x110] sm:$0xff]
  %v55 = vld [vmem:[%s0 + $0x118] sm:$0xff]
  %v56 = vld [vmem:[%s0 + $0x120] sm:$0xff]
  %v57 = vld [vmem:[%s0 + $0x128] sm:$0xf]
  %v58 = vld [vmem:[%s1] sm:$0xff]
  %v59 = vld [vmem:[%s2] sm:$0x1]
  %v61 = vlaneseq
  %v62 = vshrl.u32 %v61, 7
  %v63 = vsub.s32 0, %v62
  %v64 = vrot.slane %v59, %v63
  %vm66 = vcmask 64512
  %v68 = vsel %vm66, %v20, 0
  %v71 = vsel %vm66, %v21, 0
  %v74 = vsel %vm66, %v22, 0
  %v77 = vsel %vm66, %v23, 0
  %v80 = vsel %vm66, %v24, 0
  %v83 = vsel %vm66, %v25, 0
  %v86 = vsel %vm66, %v26, 0
  %v89 = vsel %vm66, %v27, 0
  %v92 = vsel %vm66, %v28, 0
  %v95 = vsel %vm66, %v29, 0
  %v98 = vsel %vm66, %v30, 0
  %v101 = vsel %vm66, %v31, 0
  %v104 = vsel %vm66, %v32, 0
  %v107 = vsel %vm66, %v33, 0
  %v110 = vsel %vm66, %v34, 0
  %v113 = vsel %vm66, %v35, 0
  %v116 = vsel %vm66, %v36, 0
  %v119 = vsel %vm66, %v37, 0
  %v122 = vsel %vm66, %v38, 0
  %v125 = vsel %vm66, %v39, 0
  %v128 = vsel %vm66, %v40, 0
  %v131 = vsel %vm66, %v41, 0
  %v134 = vsel %vm66, %v42, 0
  %v137 = vsel %vm66, %v43, 0
  %v140 = vsel %vm66, %v44, 0
  %v143 = vsel %vm66, %v45, 0
  %v146 = vsel %vm66, %v46, 0
  %v149 = vsel %vm66, %v47, 0
  %v152 = vsel %vm66, %v48, 0
  %v155 = vsel %vm66, %v49, 0
  %v158 = vsel %vm66, %v50, 0
  %v161 = vsel %vm66, %v51, 0
  %v164 = vsel %vm66, %v52, 0
  %v167 = vsel %vm66, %v53, 0
  %v170 = vsel %vm66, %v54, 0
  %v173 = vsel %vm66, %v55, 0
  %v176 = vsel %vm66, %v56, 0
  %v179 = vsel %vm66, %v57, 0
  %181 = vmatprep.subr.mxu0 0.0
  %182 = vmatpush1.msra.mxu0 0.0
  %183 = vmatprep.subr.mxu0 0.0
  %184 = vmatpush1.msra.mxu0 0.0
  %185 = vmatprep.subr.mxu0 0.0
  %186 = vmatpush1.msra.mxu0 0.0
  %187 = vmatprep.subr.mxu0 0.0
  %188 = vmatpush1.msra.mxu0 0.0
  %189 = vmatprep.subr.mxu0 0.0
  %190 = vmatpush1.msra.mxu0 0.0
  %191 = vmatprep.subr.mxu0 0.0
  %192 = vmatpush1.msra.mxu0 0.0
  %193 = vmatprep.subr.mxu0 0.0
  %194 = vmatpush1.msra.mxu0 0.0
  %195 = vmatprep.subr.mxu0 0.0
  %196 = vmatpush1.msra.mxu0 0.0
  %197 = vmatprep.subr.mxu0 0.0
  %198 = vmatpush1.msra.mxu0 0.0
  %199 = vmatprep.subr.mxu0 0.0
  %200 = vmatpush1.msra.mxu0 0.0
  %201 = vmatprep.subr.mxu0 0.0
  %202 = vmatpush1.msra.mxu0 0.0
  %203 = vmatprep.subr.mxu0 0.0
  %204 = vmatpush1.msra.mxu0 0.0
  %205 = vmatprep.subr.mxu0 0.0
  %206 = vmatpush1.msra.mxu0 0.0
  %207 = vmatprep.subr.mxu0 0.0
  %208 = vmatpush1.msra.mxu0 0.0
  %209 = vmatprep.subr.mxu0 0.0
  %210 = vmatpush1.msra.mxu0 0.0
  %211 = vmatprep.subr.mxu0 0.0
  %212 = vmatpush1.msra.mxu0 %v58
  %213 = vmatprep.subr.mxu0 0.0
  %214 = vmatpush2.msra.mxu0 0.0
  %215 = vmatprep.subr.mxu0 0.0
  %216 = vmatpush2.msra.mxu0 0.0
  %217 = vmatprep.subr.mxu0 0.0
  %218 = vmatpush2.msra.mxu0 0.0
  %219 = vmatprep.subr.mxu0 0.0
  %220 = vmatpush2.msra.mxu0 0.0
  %221 = vmatprep.subr.mxu0 0.0
  %222 = vmatpush2.msra.mxu0 0.0
  %223 = vmatprep.subr.mxu0 0.0
  %224 = vmatpush2.msra.mxu0 0.0
  %225 = vmatprep.subr.mxu0 0.0
  %226 = vmatpush2.msra.mxu0 0.0
  %227 = vmatprep.subr.mxu0 0.0
  %228 = vmatpush2.msra.mxu0 0.0
  %229 = vmatprep.subr.mxu0 0.0
  %230 = vmatpush2.msra.mxu0 0.0
  %231 = vmatprep.subr.mxu0 0.0
  %232 = vmatpush2.msra.mxu0 0.0
  %233 = vmatprep.subr.mxu0 0.0
  %234 = vmatpush2.msra.mxu0 0.0
  %235 = vmatprep.subr.mxu0 0.0
  %236 = vmatpush2.msra.mxu0 0.0
  %237 = vmatprep.subr.mxu0 0.0
  %238 = vmatpush2.msra.mxu0 0.0
  %239 = vmatprep.subr.mxu0 0.0
  %240 = vmatpush2.msra.mxu0 0.0
  %241 = vmatprep.subr.mxu0 0.0
  %242 = vmatpush2.msra.mxu0 0.0
  %243 = vmatprep.subr.mxu0 0.0
  %244 = vmatpush2.msra.mxu0 0.0
  %245 = vmatprep.mubr.f32.mxu0 0.0
  %246 = vmatmul.mubr.f32.gmra.mxu0 %v68
  %v247 = vpop.f32.mrf.mxu0
  %v248 = vadd.f32 %v64, %v247
  %v249 = vpop.f32.mrf.mxu0
  %250 = vmatprep.mubr.f32.mxu0 0.0
  %251 = vmatmul.mubr.f32.gmra.mxu0 %v71
  %v252 = vpop.f32.mrf.mxu0
  %v253 = vadd.f32 %v64, %v252
  %v254 = vpop.f32.mrf.mxu0
  %255 = vmatprep.mubr.f32.mxu0 0.0
  %256 = vmatmul.mubr.f32.gmra.mxu0 %v74
  %v257 = vpop.f32.mrf.mxu0
  %v258 = vadd.f32 %v64, %v257
  %v259 = vpop.f32.mrf.mxu0
  %260 = vmatprep.mubr.f32.mxu0 0.0
  %261 = vmatmul.mubr.f32.gmra.mxu0 %v77
  %v262 = vpop.f32.mrf.mxu0
  %v263 = vadd.f32 %v64, %v262
  %v264 = vpop.f32.mrf.mxu0
  %265 = vmatprep.mubr.f32.mxu0 0.0
  %266 = vmatmul.mubr.f32.gmra.mxu0 %v80
  %v267 = vpop.f32.mrf.mxu0
  %v268 = vadd.f32 %v64, %v267
  %v269 = vpop.f32.mrf.mxu0
  %270 = vmatprep.mubr.f32.mxu0 0.0
  %271 = vmatmul.mubr.f32.gmra.mxu0 %v83
  %v272 = vpop.f32.mrf.mxu0
  %v273 = vadd.f32 %v64, %v272
  %v274 = vpop.f32.mrf.mxu0
  %275 = vmatprep.mubr.f32.mxu0 0.0
  %276 = vmatmul.mubr.f32.gmra.mxu0 %v86
  %v277 = vpop.f32.mrf.mxu0
  %v278 = vadd.f32 %v64, %v277
  %v279 = vpop.f32.mrf.mxu0
  %280 = vmatprep.mubr.f32.mxu0 0.0
  %281 = vmatmul.mubr.f32.gmra.mxu0 %v89
  %v282 = vpop.f32.mrf.mxu0
  %v283 = vadd.f32 %v64, %v282
  %v284 = vpop.f32.mrf.mxu0
  %285 = vmatprep.mubr.f32.mxu0 0.0
  %286 = vmatmul.mubr.f32.gmra.mxu0 %v92
  %v287 = vpop.f32.mrf.mxu0
  %v288 = vadd.f32 %v64, %v287
  %v289 = vpop.f32.mrf.mxu0
  %290 = vmatprep.mubr.f32.mxu0 0.0
  %291 = vmatmul.mubr.f32.gmra.mxu0 %v95
  %v292 = vpop.f32.mrf.mxu0
  %v293 = vadd.f32 %v64, %v292
  %v294 = vpop.f32.mrf.mxu0
  %295 = vmatprep.mubr.f32.mxu0 0.0
  %296 = vmatmul.mubr.f32.gmra.mxu0 %v98
  %v297 = vpop.f32.mrf.mxu0
  %v298 = vadd.f32 %v64, %v297
  %v299 = vpop.f32.mrf.mxu0
  %300 = vmatprep.mubr.f32.mxu0 0.0
  %301 = vmatmul.mubr.f32.gmra.mxu0 %v101
  %v302 = vpop.f32.mrf.mxu0
  %v303 = vadd.f32 %v64, %v302
  %v304 = vpop.f32.mrf.mxu0
  %305 = vmatprep.mubr.f32.mxu0 0.0
  %306 = vmatmul.mubr.f32.gmra.mxu0 %v104
  %v307 = vpop.f32.mrf.mxu0
  %v308 = vadd.f32 %v64, %v307
  %v309 = vpop.f32.mrf.mxu0
  %310 = vmatprep.mubr.f32.mxu0 0.0
  %311 = vmatmul.mubr.f32.gmra.mxu0 %v107
  %v312 = vpop.f32.mrf.mxu0
  %v313 = vadd.f32 %v64, %v312
  %v314 = vpop.f32.mrf.mxu0
  %315 = vmatprep.mubr.f32.mxu0 0.0
  %316 = vmatmul.mubr.f32.gmra.mxu0 %v110
  %v317 = vpop.f32.mrf.mxu0
  %v318 = vadd.f32 %v64, %v317
  %v319 = vpop.f32.mrf.mxu0
  %320 = vmatprep.mubr.f32.mxu0 0.0
  %321 = vmatmul.mubr.f32.gmra.mxu0 %v113
  %v322 = vpop.f32.mrf.mxu0
  %v323 = vadd.f32 %v64, %v322
  %v324 = vpop.f32.mrf.mxu0
  %325 = vmatprep.mubr.f32.mxu0 0.0
  %326 = vmatmul.mubr.f32.gmra.mxu0 %v116
  %v327 = vpop.f32.mrf.mxu0
  %v328 = vadd.f32 %v64, %v327
  %v329 = vpop.f32.mrf.mxu0
  %330 = vmatprep.mubr.f32.mxu0 0.0
  %331 = vmatmul.mubr.f32.gmra.mxu0 %v119
  %v332 = vpop.f32.mrf.mxu0
  %v333 = vadd.f32 %v64, %v332
  %v334 = vpop.f32.mrf.mxu0
  %335 = vmatprep.mubr.f32.mxu0 0.0
  %336 = vmatmul.mubr.f32.gmra.mxu0 %v122
  %v337 = vpop.f32.mrf.mxu0
  %v338 = vadd.f32 %v64, %v337
  %v339 = vpop.f32.mrf.mxu0
  %340 = vmatprep.mubr.f32.mxu0 0.0
  %341 = vmatmul.mubr.f32.gmra.mxu0 %v125
  %v342 = vpop.f32.mrf.mxu0
  %v343 = vadd.f32 %v64, %v342
  %v344 = vpop.f32.mrf.mxu0
  %345 = vmatprep.mubr.f32.mxu0 0.0
  %346 = vmatmul.mubr.f32.gmra.mxu0 %v128
  %v347 = vpop.f32.mrf.mxu0
  %v348 = vadd.f32 %v64, %v347
  %v349 = vpop.f32.mrf.mxu0
  %350 = vmatprep.mubr.f32.mxu0 0.0
  %351 = vmatmul.mubr.f32.gmra.mxu0 %v131
  %v352 = vpop.f32.mrf.mxu0
  %v353 = vadd.f32 %v64, %v352
  %v354 = vpop.f32.mrf.mxu0
  %355 = vmatprep.mubr.f32.mxu0 0.0
  %356 = vmatmul.mubr.f32.gmra.mxu0 %v134
  %v357 = vpop.f32.mrf.mxu0
  %v358 = vadd.f32 %v64, %v357
  %v359 = vpop.f32.mrf.mxu0
  %360 = vmatprep.mubr.f32.mxu0 0.0
  %361 = vmatmul.mubr.f32.gmra.mxu0 %v137
  %v362 = vpop.f32.mrf.mxu0
  %v363 = vadd.f32 %v64, %v362
  %v364 = vpop.f32.mrf.mxu0
  %365 = vmatprep.mubr.f32.mxu0 0.0
  %366 = vmatmul.mubr.f32.gmra.mxu0 %v140
  %v367 = vpop.f32.mrf.mxu0
  %v368 = vadd.f32 %v64, %v367
  %v369 = vpop.f32.mrf.mxu0
  %370 = vmatprep.mubr.f32.mxu0 0.0
  %371 = vmatmul.mubr.f32.gmra.mxu0 %v143
  %v372 = vpop.f32.mrf.mxu0
  %v373 = vadd.f32 %v64, %v372
  %v374 = vpop.f32.mrf.mxu0
  %375 = vmatprep.mubr.f32.mxu0 0.0
  %376 = vmatmul.mubr.f32.gmra.mxu0 %v146
  %v377 = vpop.f32.mrf.mxu0
  %v378 = vadd.f32 %v64, %v377
  %v379 = vpop.f32.mrf.mxu0
  %380 = vmatprep.mubr.f32.mxu0 0.0
  %381 = vmatmul.mubr.f32.gmra.mxu0 %v149
  %v382 = vpop.f32.mrf.mxu0
  %v383 = vadd.f32 %v64, %v382
  %v384 = vpop.f32.mrf.mxu0
  %385 = vmatprep.mubr.f32.mxu0 0.0
  %386 = vmatmul.mubr.f32.gmra.mxu0 %v152
  %v387 = vpop.f32.mrf.mxu0
  %v388 = vadd.f32 %v64, %v387
  %v389 = vpop.f32.mrf.mxu0
  %390 = vmatprep.mubr.f32.mxu0 0.0
  %391 = vmatmul.mubr.f32.gmra.mxu0 %v155
  %v392 = vpop.f32.mrf.mxu0
  %v393 = vadd.f32 %v64, %v392
  %v394 = vpop.f32.mrf.mxu0
  %395 = vmatprep.mubr.f32.mxu0 0.0
  %396 = vmatmul.mubr.f32.gmra.mxu0 %v158
  %v397 = vpop.f32.mrf.mxu0
  %v398 = vadd.f32 %v64, %v397
  %v399 = vpop.f32.mrf.mxu0
  %400 = vmatprep.mubr.f32.mxu0 0.0
  %401 = vmatmul.mubr.f32.gmra.mxu0 %v161
  %v402 = vpop.f32.mrf.mxu0
  %v403 = vadd.f32 %v64, %v402
  %v404 = vpop.f32.mrf.mxu0
  %405 = vmatprep.mubr.f32.mxu0 0.0
  %406 = vmatmul.mubr.f32.gmra.mxu0 %v164
  %v407 = vpop.f32.mrf.mxu0
  %v408 = vadd.f32 %v64, %v407
  %v409 = vpop.f32.mrf.mxu0
  %410 = vmatprep.mubr.f32.mxu0 0.0
  %411 = vmatmul.mubr.f32.gmra.mxu0 %v167
  %v412 = vpop.f32.mrf.mxu0
  %v413 = vadd.f32 %v64, %v412
  %v414 = vpop.f32.mrf.mxu0
  %415 = vmatprep.mubr.f32.mxu0 0.0
  %416 = vmatmul.mubr.f32.gmra.mxu0 %v170
  %v417 = vpop.f32.mrf.mxu0
  %v418 = vadd.f32 %v64, %v417
  %v419 = vpop.f32.mrf.mxu0
  %420 = vmatprep.mubr.f32.mxu0 0.0
  %421 = vmatmul.mubr.f32.gmra.mxu0 %v173
  %v422 = vpop.f32.mrf.mxu0
  %v423 = vadd.f32 %v64, %v422
  %v424 = vpop.f32.mrf.mxu0
  %425 = vmatprep.mubr.f32.mxu0 0.0
  %426 = vmatmul.mubr.f32.gmra.mxu0 %v176
  %v427 = vpop.f32.mrf.mxu0
  %v428 = vadd.f32 %v64, %v427
  %v429 = vpop.f32.mrf.mxu0
  %430 = vmatprep.mubr.f32.mxu0 0.0
  %431 = vmatmul.mubr.f32.gmra.mxu0 %v179
  %v432 = vpop.f32.mrf.mxu0
  %v433 = vadd.f32 %v64, %v432
  %v434 = vpop.f32.mrf.mxu0
  %435 = vdwg.mxu0
  %v436 = vmax.f32 %v248, 0.0
  %v437 = vmax.f32 %v253, 0.0
  %v438 = vmax.f32 %v258, 0.0
  %v439 = vmax.f32 %v263, 0.0
  %v440 = vmax.f32 %v268, 0.0
  %v441 = vmax.f32 %v273, 0.0
  %v442 = vmax.f32 %v278, 0.0
  %v443 = vmax.f32 %v283, 0.0
  %v444 = vmax.f32 %v288, 0.0
  %v445 = vmax.f32 %v293, 0.0
  %v446 = vmax.f32 %v298, 0.0
  %v447 = vmax.f32 %v303, 0.0
  %v448 = vmax.f32 %v308, 0.0
  %v449 = vmax.f32 %v313, 0.0
  %v450 = vmax.f32 %v318, 0.0
  %v451 = vmax.f32 %v323, 0.0
  %v452 = vmax.f32 %v328, 0.0
  %v453 = vmax.f32 %v333, 0.0
  %v454 = vmax.f32 %v338, 0.0
  %v455 = vmax.f32 %v343, 0.0
  %v456 = vmax.f32 %v348, 0.0
  %v457 = vmax.f32 %v353, 0.0
  %v458 = vmax.f32 %v358, 0.0
  %v459 = vmax.f32 %v363, 0.0
  %v460 = vmax.f32 %v368, 0.0
  %v461 = vmax.f32 %v373, 0.0
  %v462 = vmax.f32 %v378, 0.0
  %v463 = vmax.f32 %v383, 0.0
  %v464 = vmax.f32 %v388, 0.0
  %v465 = vmax.f32 %v393, 0.0
  %v466 = vmax.f32 %v398, 0.0
  %v467 = vmax.f32 %v403, 0.0
  %v468 = vmax.f32 %v408, 0.0
  %v469 = vmax.f32 %v413, 0.0
  %v470 = vmax.f32 %v418, 0.0
  %v471 = vmax.f32 %v423, 0.0
  %v472 = vmax.f32 %v428, 0.0
  %v473 = vmax.f32 %v433, 0.0
  %v474 = vld [vmem:[%s3] sm:$0xff]
  %v475 = vld [vmem:[%s3 + $0x8] sm:$0xff]
  %v476 = vld [vmem:[%s3 + $0x10] sm:$0xff]
  %v477 = vld [vmem:[%s3 + $0x18] sm:$0xff]
  %v478 = vld [vmem:[%s3 + $0x20] sm:$0xff]
  %v479 = vld [vmem:[%s3 + $0x28] sm:$0xff]
  %v480 = vld [vmem:[%s3 + $0x30] sm:$0xff]
  %v481 = vld [vmem:[%s3 + $0x38] sm:$0xff]
  %v482 = vld [vmem:[%s3 + $0x40] sm:$0xff]
  %v483 = vld [vmem:[%s3 + $0x48] sm:$0xff]
  %v484 = vld [vmem:[%s3 + $0x50] sm:$0xff]
  %v485 = vld [vmem:[%s3 + $0x58] sm:$0xff]
  %v486 = vld [vmem:[%s3 + $0x60] sm:$0xff]
  %v487 = vld [vmem:[%s3 + $0x68] sm:$0xff]
  %v488 = vld [vmem:[%s3 + $0x70] sm:$0xff]
  %v489 = vld [vmem:[%s3 + $0x78] sm:$0xff]
  %v490 = vld [vmem:[%s4] sm:$0x1]
  %v492 = vlaneseq
  %v493 = vshrl.u32 %v492, 7
  %v494 = vsub.s32 0, %v493
  %v495 = vrot.slane %v490, %v494
  %497 = vmatprep.subr.mxu0 0.0
  %498 = vmatpush1.msra.mxu0 %v489
  %499 = vmatprep.subr.mxu0 0.0
  %500 = vmatpush1.msra.mxu0 %v488
  %501 = vmatprep.subr.mxu0 0.0
  %502 = vmatpush1.msra.mxu0 %v487
  %503 = vmatprep.subr.mxu0 0.0
  %504 = vmatpush1.msra.mxu0 %v486
  %505 = vmatprep.subr.mxu0 0.0
  %506 = vmatpush1.msra.mxu0 %v485
  %507 = vmatprep.subr.mxu0 0.0
  %508 = vmatpush1.msra.mxu0 %v484
  %509 = vmatprep.subr.mxu0 0.0
  %510 = vmatpush1.msra.mxu0 %v483
  %511 = vmatprep.subr.mxu0 0.0
  %512 = vmatpush1.msra.mxu0 %v482
  %513 = vmatprep.subr.mxu0 0.0
  %514 = vmatpush1.msra.mxu0 %v481
  %515 = vmatprep.subr.mxu0 0.0
  %516 = vmatpush1.msra.mxu0 %v480
  %517 = vmatprep.subr.mxu0 0.0
  %518 = vmatpush1.msra.mxu0 %v479
  %519 = vmatprep.subr.mxu0 0.0
  %520 = vmatpush1.msra.mxu0 %v478
  %521 = vmatprep.subr.mxu0 0.0
  %522 = vmatpush1.msra.mxu0 %v477
  %523 = vmatprep.subr.mxu0 0.0
  %524 = vmatpush1.msra.mxu0 %v476
  %525 = vmatprep.subr.mxu0 0.0
  %526 = vmatpush1.msra.mxu0 %v475
  %527 = vmatprep.subr.mxu0 0.0
  %528 = vmatpush1.msra.mxu0 %v474
  %529 = vmatprep.subr.mxu0 0.0
  %530 = vmatpush2.msra.mxu0 0.0
  %531 = vmatprep.subr.mxu0 0.0
  %532 = vmatpush2.msra.mxu0 0.0
  %533 = vmatprep.subr.mxu0 0.0
  %534 = vmatpush2.msra.mxu0 0.0
  %535 = vmatprep.subr.mxu0 0.0
  %536 = vmatpush2.msra.mxu0 0.0
  %537 = vmatprep.subr.mxu0 0.0
  %538 = vmatpush2.msra.mxu0 0.0
  %539 = vmatprep.subr.mxu0 0.0
  %540 = vmatpush2.msra.mxu0 0.0
  %541 = vmatprep.subr.mxu0 0.0
  %542 = vmatpush2.msra.mxu0 0.0
  %543 = vmatprep.subr.mxu0 0.0
  %544 = vmatpush2.msra.mxu0 0.0
  %545 = vmatprep.subr.mxu0 0.0
  %546 = vmatpush2.msra.mxu0 0.0
  %547 = vmatprep.subr.mxu0 0.0
  %548 = vmatpush2.msra.mxu0 0.0
  %549 = vmatprep.subr.mxu0 0.0
  %550 = vmatpush2.msra.mxu0 0.0
  %551 = vmatprep.subr.mxu0 0.0
  %552 = vmatpush2.msra.mxu0 0.0
  %553 = vmatprep.subr.mxu0 0.0
  %554 = vmatpush2.msra.mxu0 0.0
  %555 = vmatprep.subr.mxu0 0.0
  %556 = vmatpush2.msra.mxu0 0.0
  %557 = vmatprep.subr.mxu0 0.0
  %558 = vmatpush2.msra.mxu0 0.0
  %559 = vmatprep.subr.mxu0 0.0
  %560 = vmatpush2.msra.mxu0 0.0
  %561 = vmatprep.mubr.f32.mxu0 0.0
  %562 = vmatmul.mubr.f32.gmra.mxu0 %v436
  %v563 = vpop.f32.mrf.mxu0
  %v564 = vadd.f32 %v495, %v563
  %v565 = vpop.f32.mrf.mxu0
  %566 = vmatprep.mubr.f32.mxu0 0.0
  %567 = vmatmul.mubr.f32.gmra.mxu0 %v437
  %v568 = vpop.f32.mrf.mxu0
  %v569 = vadd.f32 %v495, %v568
  %v570 = vpop.f32.mrf.mxu0
  %571 = vmatprep.mubr.f32.mxu0 0.0
  %572 = vmatmul.mubr.f32.gmra.mxu0 %v438
  %v573 = vpop.f32.mrf.mxu0
  %v574 = vadd.f32 %v495, %v573
  %v575 = vpop.f32.mrf.mxu0
  %576 = vmatprep.mubr.f32.mxu0 0.0
  %577 = vmatmul.mubr.f32.gmra.mxu0 %v439
  %v578 = vpop.f32.mrf.mxu0
  %v579 = vadd.f32 %v495, %v578
  %v580 = vpop.f32.mrf.mxu0
  %581 = vmatprep.mubr.f32.mxu0 0.0
  %582 = vmatmul.mubr.f32.gmra.mxu0 %v440
  %v583 = vpop.f32.mrf.mxu0
  %v584 = vadd.f32 %v495, %v583
  %v585 = vpop.f32.mrf.mxu0
  %586 = vmatprep.mubr.f32.mxu0 0.0
  %587 = vmatmul.mubr.f32.gmra.mxu0 %v441
  %v588 = vpop.f32.mrf.mxu0
  %v589 = vadd.f32 %v495, %v588
  %v590 = vpop.f32.mrf.mxu0
  %591 = vmatprep.mubr.f32.mxu0 0.0
  %592 = vmatmul.mubr.f32.gmra.mxu0 %v442
  %v593 = vpop.f32.mrf.mxu0
  %v594 = vadd.f32 %v495, %v593
  %v595 = vpop.f32.mrf.mxu0
  %596 = vmatprep.mubr.f32.mxu0 0.0
  %597 = vmatmul.mubr.f32.gmra.mxu0 %v443
  %v598 = vpop.f32.mrf.mxu0
  %v599 = vadd.f32 %v495, %v598
  %v600 = vpop.f32.mrf.mxu0
  %601 = vmatprep.mubr.f32.mxu0 0.0
  %602 = vmatmul.mubr.f32.gmra.mxu0 %v444
  %v603 = vpop.f32.mrf.mxu0
  %v604 = vadd.f32 %v495, %v603
  %v605 = vpop.f32.mrf.mxu0
  %606 = vmatprep.mubr.f32.mxu0 0.0
  %607 = vmatmul.mubr.f32.gmra.mxu0 %v445
  %v608 = vpop.f32.mrf.mxu0
  %v609 = vadd.f32 %v495, %v608
  %v610 = vpop.f32.mrf.mxu0
  %611 = vmatprep.mubr.f32.mxu0 0.0
  %612 = vmatmul.mubr.f32.gmra.mxu0 %v446
  %v613 = vpop.f32.mrf.mxu0
  %v614 = vadd.f32 %v495, %v613
  %v615 = vpop.f32.mrf.mxu0
  %616 = vmatprep.mubr.f32.mxu0 0.0
  %617 = vmatmul.mubr.f32.gmra.mxu0 %v447
  %v618 = vpop.f32.mrf.mxu0
  %v619 = vadd.f32 %v495, %v618
  %v620 = vpop.f32.mrf.mxu0
  %621 = vmatprep.mubr.f32.mxu0 0.0
  %622 = vmatmul.mubr.f32.gmra.mxu0 %v448
  %v623 = vpop.f32.mrf.mxu0
  %v624 = vadd.f32 %v495, %v623
  %v625 = vpop.f32.mrf.mxu0
  %626 = vmatprep.mubr.f32.mxu0 0.0
  %627 = vmatmul.mubr.f32.gmra.mxu0 %v449
  %v628 = vpop.f32.mrf.mxu0
  %v629 = vadd.f32 %v495, %v628
  %v630 = vpop.f32.mrf.mxu0
  %631 = vmatprep.mubr.f32.mxu0 0.0
  %632 = vmatmul.mubr.f32.gmra.mxu0 %v450
  %v633 = vpop.f32.mrf.mxu0
  %v634 = vadd.f32 %v495, %v633
  %v635 = vpop.f32.mrf.mxu0
  %636 = vmatprep.mubr.f32.mxu0 0.0
  %637 = vmatmul.mubr.f32.gmra.mxu0 %v451
  %v638 = vpop.f32.mrf.mxu0
  %v639 = vadd.f32 %v495, %v638
  %v640 = vpop.f32.mrf.mxu0
  %641 = vmatprep.mubr.f32.mxu0 0.0
  %642 = vmatmul.mubr.f32.gmra.mxu0 %v452
  %v643 = vpop.f32.mrf.mxu0
  %v644 = vadd.f32 %v495, %v643
  %v645 = vpop.f32.mrf.mxu0
  %646 = vmatprep.mubr.f32.mxu0 0.0
  %647 = vmatmul.mubr.f32.gmra.mxu0 %v453
  %v648 = vpop.f32.mrf.mxu0
  %v649 = vadd.f32 %v495, %v648
  %v650 = vpop.f32.mrf.mxu0
  %651 = vmatprep.mubr.f32.mxu0 0.0
  %652 = vmatmul.mubr.f32.gmra.mxu0 %v454
  %v653 = vpop.f32.mrf.mxu0
  %v654 = vadd.f32 %v495, %v653
  %v655 = vpop.f32.mrf.mxu0
  %656 = vmatprep.mubr.f32.mxu0 0.0
  %657 = vmatmul.mubr.f32.gmra.mxu0 %v455
  %v658 = vpop.f32.mrf.mxu0
  %v659 = vadd.f32 %v495, %v658
  %v660 = vpop.f32.mrf.mxu0
  %661 = vmatprep.mubr.f32.mxu0 0.0
  %662 = vmatmul.mubr.f32.gmra.mxu0 %v456
  %v663 = vpop.f32.mrf.mxu0
  %v664 = vadd.f32 %v495, %v663
  %v665 = vpop.f32.mrf.mxu0
  %666 = vmatprep.mubr.f32.mxu0 0.0
  %667 = vmatmul.mubr.f32.gmra.mxu0 %v457
  %v668 = vpop.f32.mrf.mxu0
  %v669 = vadd.f32 %v495, %v668
  %v670 = vpop.f32.mrf.mxu0
  %671 = vmatprep.mubr.f32.mxu0 0.0
  %672 = vmatmul.mubr.f32.gmra.mxu0 %v458
  %v673 = vpop.f32.mrf.mxu0
  %v674 = vadd.f32 %v495, %v673
  %v675 = vpop.f32.mrf.mxu0
  %676 = vmatprep.mubr.f32.mxu0 0.0
  %677 = vmatmul.mubr.f32.gmra.mxu0 %v459
  %v678 = vpop.f32.mrf.mxu0
  %v679 = vadd.f32 %v495, %v678
  %v680 = vpop.f32.mrf.mxu0
  %681 = vmatprep.mubr.f32.mxu0 0.0
  %682 = vmatmul.mubr.f32.gmra.mxu0 %v460
  %v683 = vpop.f32.mrf.mxu0
  %v684 = vadd.f32 %v495, %v683
  %v685 = vpop.f32.mrf.mxu0
  %686 = vmatprep.mubr.f32.mxu0 0.0
  %687 = vmatmul.mubr.f32.gmra.mxu0 %v461
  %v688 = vpop.f32.mrf.mxu0
  %v689 = vadd.f32 %v495, %v688
  %v690 = vpop.f32.mrf.mxu0
  %691 = vmatprep.mubr.f32.mxu0 0.0
  %692 = vmatmul.mubr.f32.gmra.mxu0 %v462
  %v693 = vpop.f32.mrf.mxu0
  %v694 = vadd.f32 %v495, %v693
  %v695 = vpop.f32.mrf.mxu0
  %696 = vmatprep.mubr.f32.mxu0 0.0
  %697 = vmatmul.mubr.f32.gmra.mxu0 %v463
  %v698 = vpop.f32.mrf.mxu0
  %v699 = vadd.f32 %v495, %v698
  %v700 = vpop.f32.mrf.mxu0
  %701 = vmatprep.mubr.f32.mxu0 0.0
  %702 = vmatmul.mubr.f32.gmra.mxu0 %v464
  %v703 = vpop.f32.mrf.mxu0
  %v704 = vadd.f32 %v495, %v703
  %v705 = vpop.f32.mrf.mxu0
  %706 = vmatprep.mubr.f32.mxu0 0.0
  %707 = vmatmul.mubr.f32.gmra.mxu0 %v465
  %v708 = vpop.f32.mrf.mxu0
  %v709 = vadd.f32 %v495, %v708
  %v710 = vpop.f32.mrf.mxu0
  %711 = vmatprep.mubr.f32.mxu0 0.0
  %712 = vmatmul.mubr.f32.gmra.mxu0 %v466
  %v713 = vpop.f32.mrf.mxu0
  %v714 = vadd.f32 %v495, %v713
  %v715 = vpop.f32.mrf.mxu0
  %716 = vmatprep.mubr.f32.mxu0 0.0
  %717 = vmatmul.mubr.f32.gmra.mxu0 %v467
  %v718 = vpop.f32.mrf.mxu0
  %v719 = vadd.f32 %v495, %v718
  %v720 = vpop.f32.mrf.mxu0
  %721 = vmatprep.mubr.f32.mxu0 0.0
  %722 = vmatmul.mubr.f32.gmra.mxu0 %v468
  %v723 = vpop.f32.mrf.mxu0
  %v724 = vadd.f32 %v495, %v723
  %v725 = vpop.f32.mrf.mxu0
  %726 = vmatprep.mubr.f32.mxu0 0.0
  %727 = vmatmul.mubr.f32.gmra.mxu0 %v469
  %v728 = vpop.f32.mrf.mxu0
  %v729 = vadd.f32 %v495, %v728
  %v730 = vpop.f32.mrf.mxu0
  %731 = vmatprep.mubr.f32.mxu0 0.0
  %732 = vmatmul.mubr.f32.gmra.mxu0 %v470
  %v733 = vpop.f32.mrf.mxu0
  %v734 = vadd.f32 %v495, %v733
  %v735 = vpop.f32.mrf.mxu0
  %736 = vmatprep.mubr.f32.mxu0 0.0
  %737 = vmatmul.mubr.f32.gmra.mxu0 %v471
  %v738 = vpop.f32.mrf.mxu0
  %v739 = vadd.f32 %v495, %v738
  %v740 = vpop.f32.mrf.mxu0
  %741 = vmatprep.mubr.f32.mxu0 0.0
  %742 = vmatmul.mubr.f32.gmra.mxu0 %v472
  %v743 = vpop.f32.mrf.mxu0
  %v744 = vadd.f32 %v495, %v743
  %v745 = vpop.f32.mrf.mxu0
  %746 = vmatprep.mubr.f32.mxu0 0.0
  %747 = vmatmul.mubr.f32.gmra.mxu0 %v473
  %v748 = vpop.f32.mrf.mxu0
  %v749 = vadd.f32 %v495, %v748
  %v750 = vpop.f32.mrf.mxu0
  %751 = vdwg.mxu0
  %vm752 = vcmask 31744
  %753 = vst.msk [vmem:[%s5] sm:$0xff] %vm752, %v564
  %754 = vst.msk [vmem:[%s5 + $0x8] sm:$0xff] %vm752, %v569
  %755 = vst.msk [vmem:[%s5 + $0x10] sm:$0xff] %vm752, %v574
  %756 = vst.msk [vmem:[%s5 + $0x18] sm:$0xff] %vm752, %v579
  %757 = vst.msk [vmem:[%s5 + $0x20] sm:$0xff] %vm752, %v584
  %758 = vst.msk [vmem:[%s5 + $0x28] sm:$0xff] %vm752, %v589
  %759 = vst.msk [vmem:[%s5 + $0x30] sm:$0xff] %vm752, %v594
  %760 = vst.msk [vmem:[%s5 + $0x38] sm:$0xff] %vm752, %v599
  %761 = vst.msk [vmem:[%s5 + $0x40] sm:$0xff] %vm752, %v604
  %762 = vst.msk [vmem:[%s5 + $0x48] sm:$0xff] %vm752, %v609
  %763 = vst.msk [vmem:[%s5 + $0x50] sm:$0xff] %vm752, %v614
  %764 = vst.msk [vmem:[%s5 + $0x58] sm:$0xff] %vm752, %v619
  %765 = vst.msk [vmem:[%s5 + $0x60] sm:$0xff] %vm752, %v624
  %766 = vst.msk [vmem:[%s5 + $0x68] sm:$0xff] %vm752, %v629
  %767 = vst.msk [vmem:[%s5 + $0x70] sm:$0xff] %vm752, %v634
  %768 = vst.msk [vmem:[%s5 + $0x78] sm:$0xff] %vm752, %v639
  %769 = vst.msk [vmem:[%s5 + $0x80] sm:$0xff] %vm752, %v644
  %770 = vst.msk [vmem:[%s5 + $0x88] sm:$0xff] %vm752, %v649
  %771 = vst.msk [vmem:[%s5 + $0x90] sm:$0xff] %vm752, %v654
  %772 = vst.msk [vmem:[%s5 + $0x98] sm:$0xff] %vm752, %v659
  %773 = vst.msk [vmem:[%s5 + $0xa0] sm:$0xff] %vm752, %v664
  %774 = vst.msk [vmem:[%s5 + $0xa8] sm:$0xff] %vm752, %v669
  %775 = vst.msk [vmem:[%s5 + $0xb0] sm:$0xff] %vm752, %v674
  %776 = vst.msk [vmem:[%s5 + $0xb8] sm:$0xff] %vm752, %v679
  %777 = vst.msk [vmem:[%s5 + $0xc0] sm:$0xff] %vm752, %v684
  %778 = vst.msk [vmem:[%s5 + $0xc8] sm:$0xff] %vm752, %v689
  %779 = vst.msk [vmem:[%s5 + $0xd0] sm:$0xff] %vm752, %v694
  %780 = vst.msk [vmem:[%s5 + $0xd8] sm:$0xff] %vm752, %v699
  %781 = vst.msk [vmem:[%s5 + $0xe0] sm:$0xff] %vm752, %v704
  %782 = vst.msk [vmem:[%s5 + $0xe8] sm:$0xff] %vm752, %v709
  %783 = vst.msk [vmem:[%s5 + $0xf0] sm:$0xff] %vm752, %v714
  %784 = vst.msk [vmem:[%s5 + $0xf8] sm:$0xff] %vm752, %v719
  %785 = vst.msk [vmem:[%s5 + $0x100] sm:$0xff] %vm752, %v724
  %786 = vst.msk [vmem:[%s5 + $0x108] sm:$0xff] %vm752, %v729
  %787 = vst.msk [vmem:[%s5 + $0x110] sm:$0xff] %vm752, %v734
  %788 = vst.msk [vmem:[%s5 + $0x118] sm:$0xff] %vm752, %v739
  %789 = vst.msk [vmem:[%s5 + $0x120] sm:$0xff] %vm752, %v744
  %vm790 = vcmask 27648
  %791 = vst.msk [vmem:[%s5 + $0x128] sm:$0xf] %vm790, %v749
  // Predicated region
  $region22: #{tpu_custom_call.1} parent=0 // pred_check
    _
  $region23: #{tpu_custom_call.1} parent=0 // pred_check_branch
    %793 = sbr.rel (0) target = $region25
  $region24: #{tpu_custom_call.1} parent=0 // pred_region
    _
  $region25: #{tpu_custom_call.1} parent=0 // pred_fallthru
    _
  // Predicated region
  $region26: #{tpu_custom_call.1} parent=0 // pred_check
    _
  $region27: #{tpu_custom_call.1} parent=0 // pred_check_branch
    %795 = sbr.rel (0) target = $region29
  $region28: #{tpu_custom_call.1} parent=0 // pred_region
    _
  $region29: #{tpu_custom_call.1} parent=0 // pred_fallthru
    _

</llo_original>
